<compile_context>
chip_gen: v5e
topology: v5e:2x2
jax: 0.10.0
libtpu: 0.0.40
codegen_flags: <defaults>
</compile_context>

<pallas_src>
import functools

import jax
import jax.numpy as jnp
from jax.experimental import pallas as pl
from jax.experimental.pallas import tpu as pltpu


_LANE = 128      # TPU lane width (last dim)
_SUBLANE = 16    # pad batch to 16 so f32 (8) and bf16 (16) sublane tiles both fit


def _round_up(x, m):
    return ((x + m - 1) // m) * m


def _pad_to(a, shape):
    pads = [(0, s - d) for d, s in zip(a.shape, shape)]
    if all(p == (0, 0) for p in pads):
        return a
    return jnp.pad(a, pads)


# ----------------------------------------------------------------------------
# Kernel: one grid step == one RNN time step.  h is carried in VMEM scratch.
# ----------------------------------------------------------------------------
def _actor_rollout_kernel(obs_ref, h0_ref,
                          w1_ref, b1_ref,
                          wih_ref, bih_ref,
                          whh_ref, bhh_ref,
                          w2_ref, b2_ref,
                          q_ref, hseq_ref,
                          h_scr, *, hidden_pad, matmul_dtype):
    t = pl.program_id(0)
    Hp = hidden_pad

    @pl.when(t == 0)
    def _():
        h_scr[...] = h0_ref[...]

    h_in = h_scr[...]            # recurrent state, always f32
    obs = obs_ref[...]

    def mm(a, w_ref):
        # MXU matmul; operands optionally bf16, accumulation always f32.
        return jnp.dot(a.astype(matmul_dtype), w_ref[...],
                       preferred_element_type=jnp.float32)

    # fc1 + ReLU
    x = jnp.maximum(mm(obs, w1_ref) + b1_ref[...], 0.0)

    # GRUCell (PyTorch gate order [r | z | n]); every gate block is 128-lane
    # aligned because each gate was padded to Hp columns in the wrapper.
    gi = mm(x, wih_ref) + bih_ref[...]
    gh = mm(h_in, whh_ref) + bhh_ref[...]

    i_r, i_z, i_n = gi[:, 0:Hp], gi[:, Hp:2 * Hp], gi[:, 2 * Hp:3 * Hp]
    h_r, h_z, h_n = gh[:, 0:Hp], gh[:, Hp:2 * Hp], gh[:, 2 * Hp:3 * Hp]

    r = jax.nn.sigmoid(i_r + h_r)
    z = jax.nn.sigmoid(i_z + h_z)
    n = jnp.tanh(i_n + r * h_n)
    h_new = (1.0 - z) * n + z * h_in

    # fc2
    q = mm(h_new, w2_ref) + b2_ref[...]

    h_scr[...] = h_new           # carry to next step
    hseq_ref[...] = h_new        # lane-dense (Bp, Hp) store
    q_ref[...] = q               # lane-dense (Bp, Ap) store


# ----------------------------------------------------------------------------
# Wrapper: pad / transpose weights once, build the fused rollout call.
# ----------------------------------------------------------------------------
def _prepare_padded_params(params, matmul_dtype):
    H = params["w_hh"].shape[1]
    D = params["w_fc1"].shape[1]
    A = params["w_fc2"].shape[0]
    Dp, Hp, Ap = _round_up(D, _LANE), _round_up(H, _LANE), _round_up(A, _LANE)

    def gates_w(w):
        # PyTorch (3H, in) [r|z|n] -> transposed, each gate zero-padded to
        # (in_p, Hp), concatenated -> (in_p, 3*Hp).  Gate starts at lane 0 of
        # its own 128-multiple block.
        in_p = _round_up(w.shape[1], _LANE)
        blocks = [_pad_to(w[g * H:(g + 1) * H, :].T, (in_p, Hp)) for g in range(3)]
        return jnp.concatenate(blocks, axis=1).astype(matmul_dtype)

    def gates_b(b):
        blocks = [_pad_to(b[g * H:(g + 1) * H].reshape(1, -1), (1, Hp))
                  for g in range(3)]
        return jnp.concatenate(blocks, axis=1).astype(jnp.float32)

    padded = dict(
        w1=_pad_to(params["w_fc1"].T, (Dp, Hp)).astype(matmul_dtype),
        b1=_pad_to(params["b_fc1"].reshape(1, -1), (1, Hp)).astype(jnp.float32),
        wih=gates_w(params["w_ih"]),
        bih=gates_b(params["b_ih"]),
        whh=gates_w(params["w_hh"]),
        bhh=gates_b(params["b_hh"]),
        w2=_pad_to(params["w_fc2"].T, (Hp, Ap)).astype(matmul_dtype),
        b2=_pad_to(params["b_fc2"].reshape(1, -1), (1, Ap)).astype(jnp.float32),
    )
    return padded, (D, H, A, Dp, Hp, Ap)


def actor_rollout(obs_seq, hidden_state, params, *, matmul_dtype=jnp.float32):
    """Fused T-step rollout.  obs_seq: (T, B, D_in), hidden_state: (B, H).

    Returns (q_seq: (T, B, A), h_seq: (T, B, H)).  Step t of the outputs is
    exactly Actor.forward(obs_seq[t], h_{t-1}).
    """
    T, B, D = obs_seq.shape
    padded, (D0, H, A, Dp, Hp, Ap) = _prepare_padded_params(params, matmul_dtype)
    assert D == D0, "obs feature dim does not match fc1 weight"
    Bp = _round_up(B, _SUBLANE)

    obs_p = _pad_to(obs_seq, (T, Bp, Dp)).astype(matmul_dtype)
    h0_p = _pad_to(hidden_state.reshape(-1, H).astype(jnp.float32), (Bp, Hp))

    weight_args = (padded["w1"], padded["b1"], padded["wih"], padded["bih"],
                   padded["whh"], padded["bhh"], padded["w2"], padded["b2"])

    def const_spec(shape):
        # Constant block index across the whole grid -> weights stay resident
        # in VMEM, no re-DMA per time step.
        return pl.BlockSpec(shape, lambda t: (0, 0))

    in_specs = [
        pl.BlockSpec((None, Bp, Dp), lambda t: (t, 0, 0)),   # obs for step t
        const_spec((Bp, Hp)),                                # h0 (used at t=0)
    ] + [const_spec(w.shape) for w in weight_args]

    out_specs = [
        pl.BlockSpec((None, Bp, Ap), lambda t: (t, 0, 0)),   # q_t
        pl.BlockSpec((None, Bp, Hp), lambda t: (t, 0, 0)),   # h_t
    ]

    # VMEM budget (sized from actual buffers, generous floor, v7x-safe cap).
    nbytes = lambda x: x.size * x.dtype.itemsize
    resident = sum(nbytes(w) for w in weight_args) + Bp * Hp * 4
    per_step = Bp * Dp * obs_p.dtype.itemsize + Bp * (Ap + Hp) * 4
    scratch_b = Bp * Hp * 4
    vmem_limit = int(min(max(4 * (resident + 2 * per_step + scratch_b),
                             16 * 1024 * 1024), 64 * 1024 * 1024))

    flops = 2 * T * Bp * (Dp * Hp + 2 * Hp * 3 * Hp + Hp * Ap)
    transcendentals = 3 * T * Bp * Hp
    bytes_accessed = (nbytes(obs_p) + nbytes(h0_p)
                      + sum(nbytes(w) for w in weight_args)
                      + T * Bp * (Ap + Hp) * 4)

    kernel = functools.partial(_actor_rollout_kernel,
                               hidden_pad=Hp, matmul_dtype=matmul_dtype)

    q_seq, h_seq = pl.pallas_call(
        kernel,
        out_shape=(jax.ShapeDtypeStruct((T, Bp, Ap), jnp.float32),
                   jax.ShapeDtypeStruct((T, Bp, Hp), jnp.float32)),
        grid_spec=pltpu.PrefetchScalarGridSpec(
            num_scalar_prefetch=0,
            grid=(T,),
            in_specs=in_specs,
            out_specs=out_specs,
            scratch_shapes=[pltpu.VMEM((Bp, Hp), jnp.float32)],
        ),
        compiler_params=pltpu.CompilerParams(
            dimension_semantics=("arbitrary",),   # sequential recurrence over T
            vmem_limit_bytes=vmem_limit,
        ),
        cost_estimate=pl.CostEstimate(
            flops=int(flops),
            transcendentals=int(transcendentals),
            bytes_accessed=int(bytes_accessed),
        ),
    )(obs_p, h0_p, *weight_args)

    # Slice off lane/sublane padding before returning.
    return q_seq[:, :B, :A], h_seq[:, :B, :H]


def actor_forward(obs, hidden_state, params, *, matmul_dtype=jnp.float32):
    """Single-step forward with the exact semantics of Actor.forward."""
    q_seq, h_seq = actor_rollout(obs[None], hidden_state, params,
                                 matmul_dtype=matmul_dtype)
    return q_seq[0], h_seq[0]


# ----------------------------------------------------------------------------
# Synthetic parameters + plain-JAX reference (PyTorch-native layouts).
# ----------------------------------------------------------------------------
def init_params(key, input_shape, rnn_hidden_dim, n_actions):
    ks = jax.random.split(key, 8)
    H = rnn_hidden_dim
    scale = 0.1
    return {
        "w_fc1": scale * jax.random.normal(ks[0], (H, input_shape), jnp.float32),
        "b_fc1": scale * jax.random.normal(ks[1], (H,), jnp.float32),
        "w_ih":  scale * jax.random.normal(ks[2], (3 * H, H), jnp.float32),
        "b_ih":  scale * jax.random.normal(ks[3], (3 * H,), jnp.float32),
        "w_hh":  scale * jax.random.normal(ks[4], (3 * H, H), jnp.float32),
        "b_hh":  scale * jax.random.normal(ks[5], (3 * H,), jnp.float32),
        "w_fc2": scale * jax.random.normal(ks[6], (n_actions, H), jnp.float32),
        "b_fc2": scale * jax.random.normal(ks[7], (n_actions,), jnp.float32),
    }


def _reference_forward(obs, hidden_state, params):
    H = params["w_hh"].shape[0] // 3
    x = jax.nn.relu(obs @ params["w_fc1"].T + params["b_fc1"])
    h_in = hidden_state.reshape(-1, H)
    gi = x @ params["w_ih"].T + params["b_ih"]
    gh = h_in @ params["w_hh"].T + params["b_hh"]
    i_r, i_z, i_n = jnp.split(gi, 3, axis=1)
    h_r, h_z, h_n = jnp.split(gh, 3, axis=1)
    r = jax.nn.sigmoid(i_r + h_r)
    z = jax.nn.sigmoid(i_z + h_z)
    n = jnp.tanh(i_n + r * h_n)
    h = (1.0 - z) * n + z * h_in
    q = h @ params["w_fc2"].T + params["b_fc2"]
    return q, h


def _reference_rollout(obs_seq, hidden_state, params):
    H = params["w_hh"].shape[0] // 3
    h = hidden_state.reshape(-1, H)
    qs, hs = [], []
    for t in range(obs_seq.shape[0]):
        q, h = _reference_forward(obs_seq[t], h, params)
        qs.append(q)
        hs.append(h)
    return jnp.stack(qs), jnp.stack(hs)


if __name__ == "__main__":
    T, B = 12, 6
    INPUT_SHAPE = 30      # obs feature dim (non-multiple of 128 on purpose)
    RNN_HIDDEN = 32       # args.rnn_hidden_dim
    N_ACTIONS = 10        # args.n_actions

    key = jax.random.PRNGKey(0)
    k_obs, k_h, k_par = jax.random.split(key, 3)

    obs_seq = jax.random.normal(k_obs, (T, B, INPUT_SHAPE), jnp.float32)
    hidden_state = jax.random.normal(k_h, (B, RNN_HIDDEN), jnp.float32)
    params = init_params(k_par, INPUT_SHAPE, RNN_HIDDEN, N_ACTIONS)

    # 1) Single step == the PyTorch module's forward.
    q1, h1 = actor_forward(obs_seq[0], hidden_state, params)
    q1, h1 = jax.block_until_ready((q1, h1))
    q1_ref, h1_ref = _reference_forward(obs_seq[0], hidden_state, params)
    assert jnp.allclose(q1, q1_ref, atol=1e-4, rtol=1e-4), "single-step q mismatch"
    assert jnp.allclose(h1, h1_ref, atol=1e-4, rtol=1e-4), "single-step h mismatch"

    # 2) Fused T-step rollout: one pallas_call, weights resident, h in VMEM.
    q_seq, h_seq = actor_rollout(obs_seq, hidden_state, params)
    q_seq, h_seq = jax.block_until_ready((q_seq, h_seq))
    q_ref, h_ref = _reference_rollout(obs_seq, hidden_state, params)
    assert jnp.allclose(q_seq, q_ref, atol=1e-3, rtol=1e-3), "rollout q mismatch"
    assert jnp.allclose(h_seq, h_ref, atol=1e-3, rtol=1e-3), "rollout h mismatch"

    # 3) bf16 matmul-operand variant (v6e/v7x MXU path); elementwise stays f32.
    q_bf, h_bf = actor_rollout(obs_seq, hidden_state, params,
                               matmul_dtype=jnp.bfloat16)
    q_bf, h_bf = jax.block_until_ready((q_bf, h_bf))
    assert bool(jnp.all(jnp.isfinite(q_bf))) and bool(jnp.all(jnp.isfinite(h_bf)))
    assert float(jnp.max(jnp.abs(q_bf - q_ref))) < 0.25, "bf16 q drifted too far"
    assert float(jnp.max(jnp.abs(h_bf - h_ref))) < 0.25, "bf16 h drifted too far"

    print("KERNEL_OK")
</pallas_src>

<mosaic_0001>
module attributes {stable_mosaic.version = 11 : i64} {
  func.func @_actor_rollout_kernel(%arg0: i32, %arg1: memref<1x16x128xf32, #tpu.memory_space<vmem>>, %arg2: memref<16x128xf32, #tpu.memory_space<vmem>>, %arg3: memref<128x128xf32, #tpu.memory_space<vmem>>, %arg4: memref<1x128xf32, #tpu.memory_space<vmem>>, %arg5: memref<128x384xf32, #tpu.memory_space<vmem>>, %arg6: memref<1x384xf32, #tpu.memory_space<vmem>>, %arg7: memref<128x384xf32, #tpu.memory_space<vmem>>, %arg8: memref<1x384xf32, #tpu.memory_space<vmem>>, %arg9: memref<128x128xf32, #tpu.memory_space<vmem>>, %arg10: memref<1x128xf32, #tpu.memory_space<vmem>>, %arg11: memref<1x16x128xf32, #tpu.memory_space<vmem>>, %arg12: memref<1x16x128xf32, #tpu.memory_space<vmem>>, %arg13: memref<16x128xf32, #tpu.memory_space<vmem>>) attributes {dimension_semantics = [#tpu.dimension_semantics<arbitrary>], iteration_bounds = array<i64: 1>, scalar_prefetch = 0 : i64, scratch_operands = 1 : i64, tpu.core_type = #tpu.core_type<tc>, window_params = [{transform_indices = @transform_0, window_bounds = array<i64: 1, 16, 128>}, {pipeline_mode = #tpu.pipeline_mode<synchronous>, transform_indices = @transform_1, window_bounds = array<i64: 16, 128>}, {pipeline_mode = #tpu.pipeline_mode<synchronous>, transform_indices = @transform_2, window_bounds = array<i64: 128, 128>}, {pipeline_mode = #tpu.pipeline_mode<synchronous>, transform_indices = @transform_3, window_bounds = array<i64: 1, 128>}, {pipeline_mode = #tpu.pipeline_mode<synchronous>, transform_indices = @transform_4, window_bounds = array<i64: 128, 384>}, {pipeline_mode = #tpu.pipeline_mode<synchronous>, transform_indices = @transform_5, window_bounds = array<i64: 1, 384>}, {pipeline_mode = #tpu.pipeline_mode<synchronous>, transform_indices = @transform_6, window_bounds = array<i64: 128, 384>}, {pipeline_mode = #tpu.pipeline_mode<synchronous>, transform_indices = @transform_7, window_bounds = array<i64: 1, 384>}, {pipeline_mode = #tpu.pipeline_mode<synchronous>, transform_indices = @transform_8, window_bounds = array<i64: 128, 128>}, {pipeline_mode = #tpu.pipeline_mode<synchronous>, transform_indices = @transform_9, window_bounds = array<i64: 1, 128>}, {transform_indices = @transform_10, window_bounds = array<i64: 1, 16, 128>}, {transform_indices = @transform_11, window_bounds = array<i64: 1, 16, 128>}]} {
    %c0_i32 = arith.constant 0 : i32
    %0 = arith.cmpi eq, %arg0, %c0_i32 : i32
    %1 = arith.extui %0 : i1 to i32
    %c0_i32_0 = arith.constant 0 : i32
    %2 = arith.cmpi ne, %1, %c0_i32_0 : i32
    scf.if %2 {
      %c0_36 = arith.constant 0 : index
      %c0_37 = arith.constant 0 : index
      %61 = vector.load %arg2[%c0_36, %c0_37] : memref<16x128xf32, #tpu.memory_space<vmem>>, vector<16x128xf32>
      %c0_38 = arith.constant 0 : index
      %c0_39 = arith.constant 0 : index
      %62 = vector.load %arg13[%c0_38, %c0_39] : memref<16x128xf32, #tpu.memory_space<vmem>>, vector<16x128xf32>
      tpu.vector_store %arg13[%c0_38, %c0_39], %61 {strides = array<i32>} : memref<16x128xf32, #tpu.memory_space<vmem>>, vector<16x128xf32>,
    } else {
    }
    %c0 = arith.constant 0 : index
    %c0_1 = arith.constant 0 : index
    %3 = vector.load %arg13[%c0, %c0_1] : memref<16x128xf32, #tpu.memory_space<vmem>>, vector<16x128xf32>
    %c0_2 = arith.constant 0 : index
    %c0_3 = arith.constant 0 : index
    %c0_4 = arith.constant 0 : index
    %4 = vector.load %arg1[%c0_2, %c0_3, %c0_4] : memref<1x16x128xf32, #tpu.memory_space<vmem>>, vector<1x16x128xf32>
    %5 = vector.shape_cast %4 : vector<1x16x128xf32> to vector<16x128xf32>
    %c0_5 = arith.constant 0 : index
    %c0_6 = arith.constant 0 : index
    %6 = vector.load %arg3[%c0_5, %c0_6] : memref<128x128xf32, #tpu.memory_space<vmem>>, vector<128x128xf32>
    %cst = arith.constant dense<0.000000e+00> : vector<16x128xf32>
    %7 = tpu.matmul %5, %6, %cst {dimension_numbers = #tpu.dot_dimension_numbers<[1], [0], [0], [1], [0, 0, 1, 1], [], []>} : vector<16x128xf32>, vector<128x128xf32>, vector<16x128xf32> -> vector<16x128xf32>
    %c0_7 = arith.constant 0 : index
    %c0_8 = arith.constant 0 : index
    %8 = vector.load %arg4[%c0_7, %c0_8] : memref<1x128xf32, #tpu.memory_space<vmem>>, vector<1x128xf32>
    %9 = vector.broadcast %8 : vector<1x128xf32> to vector<16x128xf32>
    %10 = arith.addf %7, %9 : vector<16x128xf32>
    %cst_9 = arith.constant 0.000000e+00 : f32
    %11 = vector.broadcast %cst_9 : f32 to vector<16x128xf32>
    %12 = arith.maximumf %10, %11 : vector<16x128xf32>
    %c0_10 = arith.constant 0 : index
    %c0_11 = arith.constant 0 : index
    %13 = vector.load %arg5[%c0_10, %c0_11] : memref<128x384xf32, #tpu.memory_space<vmem>>, vector<128x384xf32>
    %cst_12 = arith.constant dense<0.000000e+00> : vector<16x384xf32>
    %14 = tpu.matmul %12, %13, %cst_12 {dimension_numbers = #tpu.dot_dimension_numbers<[1], [0], [0], [1], [0, 0, 1, 1], [], []>} : vector<16x128xf32>, vector<128x384xf32>, vector<16x384xf32> -> vector<16x384xf32>
    %c0_13 = arith.constant 0 : index
    %c0_14 = arith.constant 0 : index
    %15 = vector.load %arg6[%c0_13, %c0_14] : memref<1x384xf32, #tpu.memory_space<vmem>>, vector<1x384xf32>
    %16 = vector.broadcast %15 : vector<1x384xf32> to vector<16x384xf32>
    %17 = arith.addf %14, %16 : vector<16x384xf32>
    %c0_15 = arith.constant 0 : index
    %c0_16 = arith.constant 0 : index
    %18 = vector.load %arg7[%c0_15, %c0_16] : memref<128x384xf32, #tpu.memory_space<vmem>>, vector<128x384xf32>
    %cst_17 = arith.constant dense<0.000000e+00> : vector<16x384xf32>
    %19 = tpu.matmul %3, %18, %cst_17 {dimension_numbers = #tpu.dot_dimension_numbers<[1], [0], [0], [1], [0, 0, 1, 1], [], []>} : vector<16x128xf32>, vector<128x384xf32>, vector<16x384xf32> -> vector<16x384xf32>
    %c0_18 = arith.constant 0 : index
    %c0_19 = arith.constant 0 : index
    %20 = vector.load %arg8[%c0_18, %c0_19] : memref<1x384xf32, #tpu.memory_space<vmem>>, vector<1x384xf32>
    %21 = vector.broadcast %20 : vector<1x384xf32> to vector<16x384xf32>
    %22 = arith.addf %19, %21 : vector<16x384xf32>
    %23 = vector.extract_strided_slice %17 {offsets = [0, 0], sizes = [16, 128], strides = [1, 1]} : vector<16x384xf32> to vector<16x128xf32>
    %24 = vector.extract_strided_slice %17 {offsets = [0, 128], sizes = [16, 128], strides = [1, 1]} : vector<16x384xf32> to vector<16x128xf32>
    %25 = vector.extract_strided_slice %17 {offsets = [0, 256], sizes = [16, 128], strides = [1, 1]} : vector<16x384xf32> to vector<16x128xf32>
    %26 = vector.extract_strided_slice %22 {offsets = [0, 0], sizes = [16, 128], strides = [1, 1]} : vector<16x384xf32> to vector<16x128xf32>
    %27 = vector.extract_strided_slice %22 {offsets = [0, 128], sizes = [16, 128], strides = [1, 1]} : vector<16x384xf32> to vector<16x128xf32>
    %28 = vector.extract_strided_slice %22 {offsets = [0, 256], sizes = [16, 128], strides = [1, 1]} : vector<16x384xf32> to vector<16x128xf32>
    %29 = arith.addf %23, %26 : vector<16x128xf32>
    %30 = arith.negf %29 : vector<16x128xf32>
    %31 = math.exp %30 : vector<16x128xf32>
    %cst_20 = arith.constant 1.000000e+00 : f32
    %32 = vector.broadcast %cst_20 : f32 to vector<16x128xf32>
    %33 = arith.addf %32, %31 : vector<16x128xf32>
    %34 = arith.divf %32, %33 : vector<16x128xf32>
    %35 = arith.addf %24, %27 : vector<16x128xf32>
    %36 = arith.negf %35 : vector<16x128xf32>
    %37 = math.exp %36 : vector<16x128xf32>
    %cst_21 = arith.constant 1.000000e+00 : f32
    %38 = vector.broadcast %cst_21 : f32 to vector<16x128xf32>
    %39 = arith.addf %38, %37 : vector<16x128xf32>
    %40 = arith.divf %38, %39 : vector<16x128xf32>
    %41 = arith.mulf %34, %28 : vector<16x128xf32>
    %42 = arith.addf %25, %41 : vector<16x128xf32>
    %43 = math.tanh %42 : vector<16x128xf32>
    %cst_22 = arith.constant 1.000000e+00 : f32
    %44 = vector.broadcast %cst_22 : f32 to vector<16x128xf32>
    %45 = arith.subf %44, %40 : vector<16x128xf32>
    %46 = arith.mulf %45, %43 : vector<16x128xf32>
    %47 = arith.mulf %40, %3 : vector<16x128xf32>
    %48 = arith.addf %46, %47 : vector<16x128xf32>
    %c0_23 = arith.constant 0 : index
    %c0_24 = arith.constant 0 : index
    %49 = vector.load %arg9[%c0_23, %c0_24] : memref<128x128xf32, #tpu.memory_space<vmem>>, vector<128x128xf32>
    %cst_25 = arith.constant dense<0.000000e+00> : vector<16x128xf32>
    %50 = tpu.matmul %48, %49, %cst_25 {dimension_numbers = #tpu.dot_dimension_numbers<[1], [0], [0], [1], [0, 0, 1, 1], [], []>} : vector<16x128xf32>, vector<128x128xf32>, vector<16x128xf32> -> vector<16x128xf32>
    %c0_26 = arith.constant 0 : index
    %c0_27 = arith.constant 0 : index
    %51 = vector.load %arg10[%c0_26, %c0_27] : memref<1x128xf32, #tpu.memory_space<vmem>>, vector<1x128xf32>
    %52 = vector.broadcast %51 : vector<1x128xf32> to vector<16x128xf32>
    %53 = arith.addf %50, %52 : vector<16x128xf32>
    %c0_28 = arith.constant 0 : index
    %c0_29 = arith.constant 0 : index
    %54 = vector.load %arg13[%c0_28, %c0_29] : memref<16x128xf32, #tpu.memory_space<vmem>>, vector<16x128xf32>
    tpu.vector_store %arg13[%c0_28, %c0_29], %48 {strides = array<i32>} : memref<16x128xf32, #tpu.memory_space<vmem>>, vector<16x128xf32>,
    %c0_30 = arith.constant 0 : index
    %c0_31 = arith.constant 0 : index
    %c0_32 = arith.constant 0 : index
    %55 = vector.load %arg12[%c0_30, %c0_31, %c0_32] : memref<1x16x128xf32, #tpu.memory_space<vmem>>, vector<1x16x128xf32>
    %56 = vector.shape_cast %55 : vector<1x16x128xf32> to vector<16x128xf32>
    %57 = vector.shape_cast %48 : vector<16x128xf32> to vector<1x16x128xf32>
    tpu.vector_store %arg12[%c0_30, %c0_31, %c0_32], %57 {strides = array<i32>} : memref<1x16x128xf32, #tpu.memory_space<vmem>>, vector<1x16x128xf32>,
    %c0_33 = arith.constant 0 : index
    %c0_34 = arith.constant 0 : index
    %c0_35 = arith.constant 0 : index
    %58 = vector.load %arg11[%c0_33, %c0_34, %c0_35] : memref<1x16x128xf32, #tpu.memory_space<vmem>>, vector<1x16x128xf32>
    %59 = vector.shape_cast %58 : vector<1x16x128xf32> to vector<16x128xf32>
    %60 = vector.shape_cast %53 : vector<16x128xf32> to vector<1x16x128xf32>
    tpu.vector_store %arg11[%c0_33, %c0_34, %c0_35], %60 {strides = array<i32>} : memref<1x16x128xf32, #tpu.memory_space<vmem>>, vector<1x16x128xf32>,
    return
  }
  func.func @transform_0(%arg0: i32) -> (i32, i32, i32) {
    %c0_i32 = arith.constant 0 : i32
    %c0_i32_0 = arith.constant 0 : i32
    %c0_i32_1 = arith.constant 0 : i32
    return %arg0, %c0_i32, %c0_i32_0 : i32, i32, i32
  }
  func.func @transform_1(%arg0: i32) -> (i32, i32) {
    %c0_i32 = arith.constant 0 : i32
    %c0_i32_0 = arith.constant 0 : i32
    %c0_i32_1 = arith.constant 0 : i32
    return %c0_i32, %c0_i32_0 : i32, i32
  }
  func.func @transform_2(%arg0: i32) -> (i32, i32) {
    %c0_i32 = arith.constant 0 : i32
    %c0_i32_0 = arith.constant 0 : i32
    %c0_i32_1 = arith.constant 0 : i32
    return %c0_i32, %c0_i32_0 : i32, i32
  }
  func.func @transform_3(%arg0: i32) -> (i32, i32) {
    %c0_i32 = arith.constant 0 : i32
    %c0_i32_0 = arith.constant 0 : i32
    %c0_i32_1 = arith.constant 0 : i32
    return %c0_i32, %c0_i32_0 : i32, i32
  }
  func.func @transform_4(%arg0: i32) -> (i32, i32) {
    %c0_i32 = arith.constant 0 : i32
    %c0_i32_0 = arith.constant 0 : i32
    %c0_i32_1 = arith.constant 0 : i32
    return %c0_i32, %c0_i32_0 : i32, i32
  }
  func.func @transform_5(%arg0: i32) -> (i32, i32) {
    %c0_i32 = arith.constant 0 : i32
    %c0_i32_0 = arith.constant 0 : i32
    %c0_i32_1 = arith.constant 0 : i32
    return %c0_i32, %c0_i32_0 : i32, i32
  }
  func.func @transform_6(%arg0: i32) -> (i32, i32) {
    %c0_i32 = arith.constant 0 : i32
    %c0_i32_0 = arith.constant 0 : i32
    %c0_i32_1 = arith.constant 0 : i32
    return %c0_i32, %c0_i32_0 : i32, i32
  }
  func.func @transform_7(%arg0: i32) -> (i32, i32) {
    %c0_i32 = arith.constant 0 : i32
    %c0_i32_0 = arith.constant 0 : i32
    %c0_i32_1 = arith.constant 0 : i32
    return %c0_i32, %c0_i32_0 : i32, i32
  }
  func.func @transform_8(%arg0: i32) -> (i32, i32) {
    %c0_i32 = arith.constant 0 : i32
    %c0_i32_0 = arith.constant 0 : i32
    %c0_i32_1 = arith.constant 0 : i32
    return %c0_i32, %c0_i32_0 : i32, i32
  }
  func.func @transform_9(%arg0: i32) -> (i32, i32) {
    %c0_i32 = arith.constant 0 : i32
    %c0_i32_0 = arith.constant 0 : i32
    %c0_i32_1 = arith.constant 0 : i32
    return %c0_i32, %c0_i32_0 : i32, i32
  }
  func.func @transform_10(%arg0: i32) -> (i32, i32, i32) {
    %c0_i32 = arith.constant 0 : i32
    %c0_i32_0 = arith.constant 0 : i32
    %c0_i32_1 = arith.constant 0 : i32
    return %arg0, %c0_i32, %c0_i32_0 : i32, i32, i32
  }
  func.func @transform_11(%arg0: i32) -> (i32, i32, i32) {
    %c0_i32 = arith.constant 0 : i32
    %c0_i32_0 = arith.constant 0 : i32
    %c0_i32_1 = arith.constant 0 : i32
    return %arg0, %c0_i32, %c0_i32_0 : i32, i32, i32
  }
}

</mosaic_0001>

<llo_original>
// kernel: tpu_custom_call.1
$region0: #{tpu_custom_call.1}
  #allocation0 [shape = 'u32[]', space=smem, size = 0x4, offset = 0x4, fixed_abs, tag = 'smem constant byte address 0x4 - core index']
  #allocation1 [shape = 'u32[72,128]{1,0:T(1,128)}', space=vmem, size = 0x9000, scoped, tag = 'internal scratch']
  #allocation2 [shape = 'f32[16,128]{1,0:T(8,128)}', space=vmem, size = 0x2000, scoped, tag = 'scratch operand']
  %s0 = inlined_call_operand.hbm [shape: f32[1,16,128], index: 0, kind: input, shape index: {}]
  %s1 = inlined_call_operand.hbm [shape: f32[16,128], index: 1, kind: input, shape index: {}]
  %s2 = inlined_call_operand.hbm [shape: f32[128,128], index: 2, kind: input, shape index: {}]
  %s3 = inlined_call_operand.hbm [shape: f32[1,128], index: 3, kind: input, shape index: {}]
  %s4 = inlined_call_operand.hbm [shape: f32[128,384], index: 4, kind: input, shape index: {}]
  %s5 = inlined_call_operand.vmem [shape: f32[1,384], index: 5, kind: input, shape index: {}]
  %s6 = inlined_call_operand.hbm [shape: f32[128,384], index: 6, kind: input, shape index: {}]
  %s7 = inlined_call_operand.vmem [shape: f32[1,384], index: 7, kind: input, shape index: {}]
  %s8 = inlined_call_operand.hbm [shape: f32[128,128], index: 8, kind: input, shape index: {}]
  %s9 = inlined_call_operand.vmem [shape: f32[1,128], index: 9, kind: input, shape index: {}]
  %s10 = inlined_call_operand.hbm [shape: f32[1,16,128], index: 10, kind: output, shape index: {0}]
  %s11 = inlined_call_operand.hbm [shape: f32[1,16,128], index: 11, kind: output, shape index: {1}]
  %12 = xla_tuple %s10, %s11
  %s13 = sld [smem:[#allocation0]]
  $region90: #{tpu_custom_call.1} parent=0
    _
  %s15 = ssub.s32 1, %s13
  %s16 = scalar_select 0, %s15, %s13
  $region1: #{tpu_custom_call.1} parent=0
    #allocation3 [shape = 'u8[8192]{0}', space=vmem, size = 0x2000, scoped, tag = 'input window, operand 0, single buffered']
    #allocation4 [shape = 's32[1]{0}', space=sflag, size = 0x4, scoped, tag = 'scoped memory for tpu_custom_call.1']
    #allocation5 [shape = 's32[1]{0}', space=sflag, size = 0x4, scoped, tag = 'scoped memory for tpu_custom_call.1']
    #allocation6 [shape = 'u8[8192]{0}', space=vmem, size = 0x2000, scoped, tag = 'input window, operand 1, single buffered']
    #allocation7 [shape = 's32[1]{0}', space=sflag, size = 0x4, scoped, tag = 'scoped memory for tpu_custom_call.1']
    #allocation8 [shape = 'u8[65536]{0}', space=vmem, size = 0x10000, scoped, tag = 'input window, operand 2, single buffered']
    #allocation9 [shape = 'u8[512]{0}', space=vmem, size = 0x400, scoped, tag = 'input window, operand 3, single buffered']
    #allocation10 [shape = 's32[1]{0}', space=sflag, size = 0x4, scoped, tag = 'scoped memory for tpu_custom_call.1']
    #allocation11 [shape = 'u8[196608]{0}', space=vmem, size = 0x30000, scoped, tag = 'input window, operand 4, single buffered']
    #allocation12 [shape = 'u8[196608]{0}', space=vmem, size = 0x30000, scoped, tag = 'input window, operand 6, single buffered']
    #allocation13 [shape = 's32[1]{0}', space=sflag, size = 0x4, scoped, tag = 'scoped memory for tpu_custom_call.1']
    #allocation14 [shape = 'u8[65536]{0}', space=vmem, size = 0x10000, scoped, tag = 'input window, operand 8, single buffered']
    #allocation15 [shape = 'u8[8192]{0}', space=vmem, size = 0x2000, scoped, tag = 'output window, operand 0, single buffered']
    #allocation16 [shape = 'u8[8192]{0}', space=vmem, size = 0x2000, scoped, tag = 'output window, operand 1, single buffered']
    #allocation17 [shape = 's32[1]{0}', space=sflag, size = 0x4, scoped, tag = 'scoped memory for tpu_custom_call.1']
    %17 = vsyncpa [#allocation4], 0
    %18 = vsyncpa [#allocation7], 0
    %19 = vsyncpa [#allocation10], 0
    %20 = vsyncpa [#allocation13], 0
    %21 = vsyncpa [#allocation5], 0
    %22 = vsyncpa [#allocation17], 0
    // Predicated region
    $region2: #{tpu_custom_call.1} parent=1 // pred_check
      _
    $region3: #{tpu_custom_call.1} parent=1 // pred_check_branch
      %24 = sbr.rel (0) target = $region5
    $region4: #{tpu_custom_call.1} parent=1 // pred_region
      %26 = vsyncadd [#allocation4], 0
      %s27 = sshll.u32 %s0, 4
      %s28 = int_to_ptr.hbm [resolvable:$true] %s27
      %s29 = sshll.u32 [#allocation3], 4
      %s30 = int_to_ptr.vmem [resolvable:$true] %s29
      %35 = dma.hbm_to_vmem [thread:$0]  %s28, 256, %s30, [#allocation4], 128, 128, 8
    $region5: #{tpu_custom_call.1} parent=1 // pred_fallthru
      _
    // Predicated region
    $region6: #{tpu_custom_call.1} parent=1 // pred_check
      _
    $region7: #{tpu_custom_call.1} parent=1 // pred_check_branch
      %37 = sbr.rel (0) target = $region9
    $region8: #{tpu_custom_call.1} parent=1 // pred_region
      %39 = vsyncadd [#allocation7], 0
      %s40 = sshll.u32 %s1, 4
      %s41 = int_to_ptr.hbm [resolvable:$true] %s40
      %s42 = sshll.u32 [#allocation6], 4
      %s43 = int_to_ptr.vmem [resolvable:$true] %s42
      %48 = dma.hbm_to_vmem [thread:$0]  %s41, 256, %s43, [#allocation7], 128, 128, 8
    $region9: #{tpu_custom_call.1} parent=1 // pred_fallthru
      _
    // Predicated region
    $region10: #{tpu_custom_call.1} parent=1 // pred_check
      _
    $region11: #{tpu_custom_call.1} parent=1 // pred_check_branch
      %50 = sbr.rel (0) target = $region13
    $region12: #{tpu_custom_call.1} parent=1 // pred_region
      %52 = vsyncadd [#allocation7], 0
      %s53 = sshll.u32 %s2, 4
      %s54 = int_to_ptr.hbm [resolvable:$true] %s53
      %s55 = sshll.u32 [#allocation8], 4
      %s56 = int_to_ptr.vmem [resolvable:$true] %s55
      %61 = dma.hbm_to_vmem [thread:$0]  %s54, 2048, %s56, [#allocation7], 128, 128, 8
    $region13: #{tpu_custom_call.1} parent=1 // pred_fallthru
      _
    // Predicated region
    $region14: #{tpu_custom_call.1} parent=1 // pred_check
      _
    $region15: #{tpu_custom_call.1} parent=1 // pred_check_branch
      %63 = sbr.rel (0) target = $region17
    $region16: #{tpu_custom_call.1} parent=1 // pred_region
      %65 = vsyncadd [#allocation10], 0
      %s67 = sshll.u32 %s3, 4
      %s68 = int_to_ptr.hbm [resolvable:$true] %s67
      %s69 = sshll.u32 [#allocation9], 4
      %s70 = int_to_ptr.vmem [resolvable:$true] %s69
      %72 = dma.hbm_to_vmem [thread:$0]  %s68, 16, %s70, [#allocation10]
    $region17: #{tpu_custom_call.1} parent=1 // pred_fallthru
      _
    // Predicated region
    $region18: #{tpu_custom_call.1} parent=1 // pred_check
      _
    $region19: #{tpu_custom_call.1} parent=1 // pred_check_branch
      %74 = sbr.rel (0) target = $region21
    $region20: #{tpu_custom_call.1} parent=1 // pred_region
      %76 = vsyncadd [#allocation10], 0
      %s77 = sshll.u32 %s4, 4
      %s78 = int_to_ptr.hbm [resolvable:$true] %s77
      %s79 = sshll.u32 [#allocation11], 4
      %s80 = int_to_ptr.vmem [resolvable:$true] %s79
      %85 = dma.hbm_to_vmem [thread:$0]  %s78, 6144, %s80, [#allocation10], 384, 384, 24
    $region21: #{tpu_custom_call.1} parent=1 // pred_fallthru
      _
    // Predicated region
    $region22: #{tpu_custom_call.1} parent=1 // pred_check
      _
    $region23: #{tpu_custom_call.1} parent=1 // pred_check_branch
      %87 = sbr.rel (0) target = $region25
    $region24: #{tpu_custom_call.1} parent=1 // pred_region
      _
    $region25: #{tpu_custom_call.1} parent=1 // pred_fallthru
      _
    // Predicated region
    $region26: #{tpu_custom_call.1} parent=1 // pred_check
      _
    $region27: #{tpu_custom_call.1} parent=1 // pred_check_branch
      %89 = sbr.rel (0) target = $region29
    $region28: #{tpu_custom_call.1} parent=1 // pred_region
      %91 = vsyncadd [#allocation13], 0
      %s92 = sshll.u32 %s6, 4
      %s93 = int_to_ptr.hbm [resolvable:$true] %s92
      %s94 = sshll.u32 [#allocation12], 4
      %s95 = int_to_ptr.vmem [resolvable:$true] %s94
      %100 = dma.hbm_to_vmem [thread:$0]  %s93, 6144, %s95, [#allocation13], 384, 384, 24
    $region29: #{tpu_custom_call.1} parent=1 // pred_fallthru
      _
    // Predicated region
    $region30: #{tpu_custom_call.1} parent=1 // pred_check
      _
    $region31: #{tpu_custom_call.1} parent=1 // pred_check_branch
      %102 = sbr.rel (0) target = $region33
    $region32: #{tpu_custom_call.1} parent=1 // pred_region
      _
    $region33: #{tpu_custom_call.1} parent=1 // pred_fallthru
      _
    // Predicated region
    $region34: #{tpu_custom_call.1} parent=1 // pred_check
      _
    $region35: #{tpu_custom_call.1} parent=1 // pred_check_branch
      %104 = sbr.rel (0) target = $region37
    $region36: #{tpu_custom_call.1} parent=1 // pred_region
      %106 = vsyncadd [#allocation13], 0
      %s107 = sshll.u32 %s8, 4
      %s108 = int_to_ptr.hbm [resolvable:$true] %s107
      %s109 = sshll.u32 [#allocation14], 4
      %s110 = int_to_ptr.vmem [resolvable:$true] %s109
      %115 = dma.hbm_to_vmem [thread:$0]  %s108, 2048, %s110, [#allocation13], 128, 128, 8
    $region37: #{tpu_custom_call.1} parent=1 // pred_fallthru
      _
    // Predicated region
    $region38: #{tpu_custom_call.1} parent=1 // pred_check
      _
    $region39: #{tpu_custom_call.1} parent=1 // pred_check_branch
      %117 = sbr.rel (0) target = $region41
    $region40: #{tpu_custom_call.1} parent=1 // pred_region
      _
    $region41: #{tpu_custom_call.1} parent=1 // pred_fallthru
      _
    // Predicated region
    $region42: #{tpu_custom_call.1} parent=1 // pred_check
      _
    $region43: #{tpu_custom_call.1} parent=1 // pred_check_branch
      %119 = sbr.rel (0) target = $region45
    $region44: #{tpu_custom_call.1} parent=1 // pred_region
      %121 = dma.done [#allocation4], 256
    $region45: #{tpu_custom_call.1} parent=1 // pred_fallthru
      _
    // Predicated region
    $region46: #{tpu_custom_call.1} parent=1 // pred_check
      _
    $region47: #{tpu_custom_call.1} parent=1 // pred_check_branch
      %123 = sbr.rel (0) target = $region49
    $region48: #{tpu_custom_call.1} parent=1 // pred_region
      %125 = dma.done [#allocation7], 256
    $region49: #{tpu_custom_call.1} parent=1 // pred_fallthru
      _
    // Predicated region
    $region50: #{tpu_custom_call.1} parent=1 // pred_check
      _
    $region51: #{tpu_custom_call.1} parent=1 // pred_check_branch
      %127 = sbr.rel (0) target = $region53
    $region52: #{tpu_custom_call.1} parent=1 // pred_region
      %129 = dma.done [#allocation7], 2048
    $region53: #{tpu_custom_call.1} parent=1 // pred_fallthru
      _
    // Predicated region
    $region54: #{tpu_custom_call.1} parent=1 // pred_check
      _
    $region55: #{tpu_custom_call.1} parent=1 // pred_check_branch
      %131 = sbr.rel (0) target = $region57
    $region56: #{tpu_custom_call.1} parent=1 // pred_region
      %133 = dma.done [#allocation10], 16
    $region57: #{tpu_custom_call.1} parent=1 // pred_fallthru
      _
    // Predicated region
    $region58: #{tpu_custom_call.1} parent=1 // pred_check
      _
    $region59: #{tpu_custom_call.1} parent=1 // pred_check_branch
      %135 = sbr.rel (0) target = $region61
    $region60: #{tpu_custom_call.1} parent=1 // pred_region
      %137 = dma.done [#allocation10], 6144
    $region61: #{tpu_custom_call.1} parent=1 // pred_fallthru
      _
    // Predicated region
    $region62: #{tpu_custom_call.1} parent=1 // pred_check
      _
    $region63: #{tpu_custom_call.1} parent=1 // pred_check_branch
      %139 = sbr.rel (0) target = $region65
    $region64: #{tpu_custom_call.1} parent=1 // pred_region
      %141 = dma.done [#allocation13], 6144
    $region65: #{tpu_custom_call.1} parent=1 // pred_fallthru
      _
    // Predicated region
    $region66: #{tpu_custom_call.1} parent=1 // pred_check
      _
    $region67: #{tpu_custom_call.1} parent=1 // pred_check_branch
      %143 = sbr.rel (0) target = $region69
    $region68: #{tpu_custom_call.1} parent=1 // pred_region
      %145 = dma.done [#allocation13], 2048
    $region69: #{tpu_custom_call.1} parent=1 // pred_fallthru
      _
    %p146 = scmp.eq.s32.totalorder 0, 0
    // Predicated region
    $region70: #{tpu_custom_call.1} parent=1 // pred_check
      %p147 = pneg %p146
    $region71: #{tpu_custom_call.1} parent=1 // pred_check_branch
      %149 = sbr.rel (%p147) target = $region73
    $region72: #{tpu_custom_call.1} parent=1 // pred_region
      %v150 = vld [vmem:[#allocation6] sm:$0xff]
      %v151 = vld [vmem:[#allocation6 + $0x8] sm:$0xff]
      %152 = vst [vmem:[#allocation2] sm:$0xff] %v150
      %153 = vst [vmem:[#allocation2 + $0x8] sm:$0xff] %v151
    $region73: #{tpu_custom_call.1} parent=1 // pred_fallthru
      _
    %v154 = vld [vmem:[#allocation2] sm:$0xff]
    %v155 = vld [vmem:[#allocation2 + $0x8] sm:$0xff]
    %v156 = vld [vmem:[#allocation3] sm:$0xff]
    %v157 = vld [vmem:[#allocation3 + $0x8] sm:$0xff]
    %v158 = vld [vmem:[#allocation8] sm:$0xff]
    %v159 = vld [vmem:[#allocation8 + $0x8] sm:$0xff]
    %v160 = vld [vmem:[#allocation8 + $0x10] sm:$0xff]
    %v161 = vld [vmem:[#allocation8 + $0x18] sm:$0xff]
    %v162 = vld [vmem:[#allocation8 + $0x20] sm:$0xff]
    %v163 = vld [vmem:[#allocation8 + $0x28] sm:$0xff]
    %v164 = vld [vmem:[#allocation8 + $0x30] sm:$0xff]
    %v165 = vld [vmem:[#allocation8 + $0x38] sm:$0xff]
    %v166 = vld [vmem:[#allocation8 + $0x40] sm:$0xff]
    %v167 = vld [vmem:[#allocation8 + $0x48] sm:$0xff]
    %v168 = vld [vmem:[#allocation8 + $0x50] sm:$0xff]
    %v169 = vld [vmem:[#allocation8 + $0x58] sm:$0xff]
    %v170 = vld [vmem:[#allocation8 + $0x60] sm:$0xff]
    %v171 = vld [vmem:[#allocation8 + $0x68] sm:$0xff]
    %v172 = vld [vmem:[#allocation8 + $0x70] sm:$0xff]
    %v173 = vld [vmem:[#allocation8 + $0x78] sm:$0xff]
    %v174 = vld [vmem:[#allocation9] sm:$0x1]
    %v176 = vperm.slane %v174, 0
    %178 = vmatpush.msra.mxu0 %v173
    %179 = vmatpush.msra.mxu0 %v172
    %180 = vmatpush.msra.mxu0 %v171
    %181 = vmatpush.msra.mxu0 %v170
    %182 = vmatpush.msra.mxu0 %v169
    %183 = vmatpush.msra.mxu0 %v168
    %184 = vmatpush.msra.mxu0 %v167
    %185 = vmatpush.msra.mxu0 %v166
    %186 = vmatpush.msra.mxu0 %v165
    %187 = vmatpush.msra.mxu0 %v164
    %188 = vmatpush.msra.mxu0 %v163
    %189 = vmatpush.msra.mxu0 %v162
    %190 = vmatpush.msra.mxu0 %v161
    %191 = vmatpush.msra.mxu0 %v160
    %192 = vmatpush.msra.mxu0 %v159
    %193 = vmatpush.msra.mxu0 %v158
    %194 = vmatmul.f32.gmra.mxu0 %v156
    %v195 = vpop.f32.mrf.mxu0
    %v196 = vadd.f32 %v176, %v195
    %197 = vmatmul.f32.gmra.mxu0 %v157
    %v198 = vpop.f32.mrf.mxu0
    %v199 = vadd.f32 %v176, %v198
    %200 = vdwg.mxu0
    %v201 = vmax.f32 %v196, 0.0
    %v202 = vmax.f32 %v199, 0.0
    %v203 = vld [vmem:[#allocation11] sm:$0xff]
    %v204 = vld [vmem:[#allocation11 + $0x8] sm:$0xff]
    %v205 = vld [vmem:[#allocation11 + $0x10] sm:$0xff]
    %v206 = vld [vmem:[#allocation11 + $0x18] sm:$0xff]
    %v207 = vld [vmem:[#allocation11 + $0x20] sm:$0xff]
    %v208 = vld [vmem:[#allocation11 + $0x28] sm:$0xff]
    %v209 = vld [vmem:[#allocation11 + $0x30] sm:$0xff]
    %v210 = vld [vmem:[#allocation11 + $0x38] sm:$0xff]
    %v211 = vld [vmem:[#allocation11 + $0x40] sm:$0xff]
    %v212 = vld [vmem:[#allocation11 + $0x48] sm:$0xff]
    %v213 = vld [vmem:[#allocation11 + $0x50] sm:$0xff]
    %v214 = vld [vmem:[#allocation11 + $0x58] sm:$0xff]
    %v215 = vld [vmem:[#allocation11 + $0x60] sm:$0xff]
    %v216 = vld [vmem:[#allocation11 + $0x68] sm:$0xff]
    %v217 = vld [vmem:[#allocation11 + $0x70] sm:$0xff]
    %v218 = vld [vmem:[#allocation11 + $0x78] sm:$0xff]
    %v219 = vld [vmem:[#allocation11 + $0x80] sm:$0xff]
    %v220 = vld [vmem:[#allocation11 + $0x88] sm:$0xff]
    %v221 = vld [vmem:[#allocation11 + $0x90] sm:$0xff]
    %v222 = vld [vmem:[#allocation11 + $0x98] sm:$0xff]
    %v223 = vld [vmem:[#allocation11 + $0xa0] sm:$0xff]
    %v224 = vld [vmem:[#allocation11 + $0xa8] sm:$0xff]
    %v225 = vld [vmem:[#allocation11 + $0xb0] sm:$0xff]
    %v226 = vld [vmem:[#allocation11 + $0xb8] sm:$0xff]
    %v227 = vld [vmem:[#allocation11 + $0xc0] sm:$0xff]
    %v228 = vld [vmem:[#allocation11 + $0xc8] sm:$0xff]
    %v229 = vld [vmem:[#allocation11 + $0xd0] sm:$0xff]
    %v230 = vld [vmem:[#allocation11 + $0xd8] sm:$0xff]
    %v231 = vld [vmem:[#allocation11 + $0xe0] sm:$0xff]
    %v232 = vld [vmem:[#allocation11 + $0xe8] sm:$0xff]
    %v233 = vld [vmem:[#allocation11 + $0xf0] sm:$0xff]
    %v234 = vld [vmem:[#allocation11 + $0xf8] sm:$0xff]
    %v235 = vld [vmem:[#allocation11 + $0x100] sm:$0xff]
    %v236 = vld [vmem:[#allocation11 + $0x108] sm:$0xff]
    %v237 = vld [vmem:[#allocation11 + $0x110] sm:$0xff]
    %v238 = vld [vmem:[#allocation11 + $0x118] sm:$0xff]
    %v239 = vld [vmem:[#allocation11 + $0x120] sm:$0xff]
    %v240 = vld [vmem:[#allocation11 + $0x128] sm:$0xff]
    %v241 = vld [vmem:[#allocation11 + $0x130] sm:$0xff]
    %v242 = vld [vmem:[#allocation11 + $0x138] sm:$0xff]
    %v243 = vld [vmem:[#allocation11 + $0x140] sm:$0xff]
    %v244 = vld [vmem:[#allocation11 + $0x148] sm:$0xff]
    %v245 = vld [vmem:[#allocation11 + $0x150] sm:$0xff]
    %v246 = vld [vmem:[#allocation11 + $0x158] sm:$0xff]
    %v247 = vld [vmem:[#allocation11 + $0x160] sm:$0xff]
    %v248 = vld [vmem:[#allocation11 + $0x168] sm:$0xff]
    %v249 = vld [vmem:[#allocation11 + $0x170] sm:$0xff]
    %v250 = vld [vmem:[#allocation11 + $0x178] sm:$0xff]
    %v251 = vld [vmem:[%s5] sm:$0x7]
    %v253 = vperm.slane %v251, 0
    %v254 = vperm.slane %v251, 1
    %v255 = vperm.slane %v251, 2
    %259 = vmatpush.msra.mxu0 %v248
    %260 = vmatpush.msra.mxu0 %v245
    %261 = vmatpush.msra.mxu0 %v242
    %262 = vmatpush.msra.mxu0 %v239
    %263 = vmatpush.msra.mxu0 %v236
    %264 = vmatpush.msra.mxu0 %v233
    %265 = vmatpush.msra.mxu0 %v230
    %266 = vmatpush.msra.mxu0 %v227
    %267 = vmatpush.msra.mxu0 %v224
    %268 = vmatpush.msra.mxu0 %v221
    %269 = vmatpush.msra.mxu0 %v218
    %270 = vmatpush.msra.mxu0 %v215
    %271 = vmatpush.msra.mxu0 %v212
    %272 = vmatpush.msra.mxu0 %v209
    %273 = vmatpush.msra.mxu0 %v206
    %274 = vmatpush.msra.mxu0 %v203
    %275 = vmatmul.f32.gmra.mxu0 %v201
    %v276 = vpop.f32.mrf.mxu0
    %v277 = vadd.f32 %v253, %v276
    %278 = vmatmul.f32.gmra.mxu0 %v202
    %v279 = vpop.f32.mrf.mxu0
    %v280 = vadd.f32 %v253, %v279
    %281 = vdwg.mxu0
    %282 = vmatpush.msra.mxu0 %v249
    %283 = vmatpush.msra.mxu0 %v246
    %284 = vmatpush.msra.mxu0 %v243
    %285 = vmatpush.msra.mxu0 %v240
    %286 = vmatpush.msra.mxu0 %v237
    %287 = vmatpush.msra.mxu0 %v234
    %288 = vmatpush.msra.mxu0 %v231
    %289 = vmatpush.msra.mxu0 %v228
    %290 = vmatpush.msra.mxu0 %v225
    %291 = vmatpush.msra.mxu0 %v222
    %292 = vmatpush.msra.mxu0 %v219
    %293 = vmatpush.msra.mxu0 %v216
    %294 = vmatpush.msra.mxu0 %v213
    %295 = vmatpush.msra.mxu0 %v210
    %296 = vmatpush.msra.mxu0 %v207
    %297 = vmatpush.msra.mxu0 %v204
    %298 = vmatmul.f32.gmra.mxu0 %v201
    %v299 = vpop.f32.mrf.mxu0
    %v300 = vadd.f32 %v254, %v299
    %301 = vmatmul.f32.gmra.mxu0 %v202
    %v302 = vpop.f32.mrf.mxu0
    %v303 = vadd.f32 %v254, %v302
    %304 = vdwg.mxu0
    %305 = vmatpush.msra.mxu0 %v250
    %306 = vmatpush.msra.mxu0 %v247
    %307 = vmatpush.msra.mxu0 %v244
    %308 = vmatpush.msra.mxu0 %v241
    %309 = vmatpush.msra.mxu0 %v238
    %310 = vmatpush.msra.mxu0 %v235
    %311 = vmatpush.msra.mxu0 %v232
    %312 = vmatpush.msra.mxu0 %v229
    %313 = vmatpush.msra.mxu0 %v226
    %314 = vmatpush.msra.mxu0 %v223
    %315 = vmatpush.msra.mxu0 %v220
    %316 = vmatpush.msra.mxu0 %v217
    %317 = vmatpush.msra.mxu0 %v214
    %318 = vmatpush.msra.mxu0 %v211
    %319 = vmatpush.msra.mxu0 %v208
    %320 = vmatpush.msra.mxu0 %v205
    %321 = vmatmul.f32.gmra.mxu0 %v201
    %v322 = vpop.f32.mrf.mxu0
    %v323 = vadd.f32 %v255, %v322
    %324 = vmatmul.f32.gmra.mxu0 %v202
    %v325 = vpop.f32.mrf.mxu0
    %v326 = vadd.f32 %v255, %v325
    %327 = vdwg.mxu0
    %v328 = vld [vmem:[#allocation12] sm:$0xff]
    %v329 = vld [vmem:[#allocation12 + $0x8] sm:$0xff]
    %v330 = vld [vmem:[#allocation12 + $0x10] sm:$0xff]
    %v331 = vld [vmem:[#allocation12 + $0x18] sm:$0xff]
    %v332 = vld [vmem:[#allocation12 + $0x20] sm:$0xff]
    %v333 = vld [vmem:[#allocation12 + $0x28] sm:$0xff]
    %v334 = vld [vmem:[#allocation12 + $0x30] sm:$0xff]
    %v335 = vld [vmem:[#allocation12 + $0x38] sm:$0xff]
    %v336 = vld [vmem:[#allocation12 + $0x40] sm:$0xff]
    %v337 = vld [vmem:[#allocation12 + $0x48] sm:$0xff]
    %v338 = vld [vmem:[#allocation12 + $0x50] sm:$0xff]
    %v339 = vld [vmem:[#allocation12 + $0x58] sm:$0xff]
    %v340 = vld [vmem:[#allocation12 + $0x60] sm:$0xff]
    %v341 = vld [vmem:[#allocation12 + $0x68] sm:$0xff]
    %v342 = vld [vmem:[#allocation12 + $0x70] sm:$0xff]
    %v343 = vld [vmem:[#allocation12 + $0x78] sm:$0xff]
    %v344 = vld [vmem:[#allocation12 + $0x80] sm:$0xff]
    %v345 = vld [vmem:[#allocation12 + $0x88] sm:$0xff]
    %v346 = vld [vmem:[#allocation12 + $0x90] sm:$0xff]
    %v347 = vld [vmem:[#allocation12 + $0x98] sm:$0xff]
    %v348 = vld [vmem:[#allocation12 + $0xa0] sm:$0xff]
    %v349 = vld [vmem:[#allocation12 + $0xa8] sm:$0xff]
    %v350 = vld [vmem:[#allocation12 + $0xb0] sm:$0xff]
    %v351 = vld [vmem:[#allocation12 + $0xb8] sm:$0xff]
    %v352 = vld [vmem:[#allocation12 + $0xc0] sm:$0xff]
    %v353 = vld [vmem:[#allocation12 + $0xc8] sm:$0xff]
    %v354 = vld [vmem:[#allocation12 + $0xd0] sm:$0xff]
    %v355 = vld [vmem:[#allocation12 + $0xd8] sm:$0xff]
    %v356 = vld [vmem:[#allocation12 + $0xe0] sm:$0xff]
    %v357 = vld [vmem:[#allocation12 + $0xe8] sm:$0xff]
    %v358 = vld [vmem:[#allocation12 + $0xf0] sm:$0xff]
    %v359 = vld [vmem:[#allocation12 + $0xf8] sm:$0xff]
    %v360 = vld [vmem:[#allocation12 + $0x100] sm:$0xff]
    %v361 = vld [vmem:[#allocation12 + $0x108] sm:$0xff]
    %v362 = vld [vmem:[#allocation12 + $0x110] sm:$0xff]
    %v363 = vld [vmem:[#allocation12 + $0x118] sm:$0xff]
    %v364 = vld [vmem:[#allocation12 + $0x120] sm:$0xff]
    %v365 = vld [vmem:[#allocation12 + $0x128] sm:$0xff]
    %v366 = vld [vmem:[#allocation12 + $0x130] sm:$0xff]
    %v367 = vld [vmem:[#allocation12 + $0x138] sm:$0xff]
    %v368 = vld [vmem:[#allocation12 + $0x140] sm:$0xff]
    %v369 = vld [vmem:[#allocation12 + $0x148] sm:$0xff]
    %v370 = vld [vmem:[#allocation12 + $0x150] sm:$0xff]
    %v371 = vld [vmem:[#allocation12 + $0x158] sm:$0xff]
    %v372 = vld [vmem:[#allocation12 + $0x160] sm:$0xff]
    %v373 = vld [vmem:[#allocation12 + $0x168] sm:$0xff]
    %v374 = vld [vmem:[#allocation12 + $0x170] sm:$0xff]
    %v375 = vld [vmem:[#allocation12 + $0x178] sm:$0xff]
    %v376 = vld [vmem:[%s7] sm:$0x7]
    %v378 = vperm.slane %v376, 0
    %v379 = vperm.slane %v376, 1
    %v380 = vperm.slane %v376, 2
    %384 = vmatpush.msra.mxu0 %v373
    %385 = vmatpush.msra.mxu0 %v370
    %386 = vmatpush.msra.mxu0 %v367
    %387 = vmatpush.msra.mxu0 %v364
    %388 = vmatpush.msra.mxu0 %v361
    %389 = vmatpush.msra.mxu0 %v358
    %390 = vmatpush.msra.mxu0 %v355
    %391 = vmatpush.msra.mxu0 %v352
    %392 = vmatpush.msra.mxu0 %v349
    %393 = vmatpush.msra.mxu0 %v346
    %394 = vmatpush.msra.mxu0 %v343
    %395 = vmatpush.msra.mxu0 %v340
    %396 = vmatpush.msra.mxu0 %v337
    %397 = vmatpush.msra.mxu0 %v334
    %398 = vmatpush.msra.mxu0 %v331
    %399 = vmatpush.msra.mxu0 %v328
    %400 = vmatmul.f32.gmra.mxu0 %v154
    %v401 = vpop.f32.mrf.mxu0
    %v402 = vadd.f32 %v378, %v401
    %403 = vmatmul.f32.gmra.mxu0 %v155
    %v404 = vpop.f32.mrf.mxu0
    %v405 = vadd.f32 %v378, %v404
    %406 = vdwg.mxu0
    %407 = vmatpush.msra.mxu0 %v374
    %408 = vmatpush.msra.mxu0 %v371
    %409 = vmatpush.msra.mxu0 %v368
    %410 = vmatpush.msra.mxu0 %v365
    %411 = vmatpush.msra.mxu0 %v362
    %412 = vmatpush.msra.mxu0 %v359
    %413 = vmatpush.msra.mxu0 %v356
    %414 = vmatpush.msra.mxu0 %v353
    %415 = vmatpush.msra.mxu0 %v350
    %416 = vmatpush.msra.mxu0 %v347
    %417 = vmatpush.msra.mxu0 %v344
    %418 = vmatpush.msra.mxu0 %v341
    %419 = vmatpush.msra.mxu0 %v338
    %420 = vmatpush.msra.mxu0 %v335
    %421 = vmatpush.msra.mxu0 %v332
    %422 = vmatpush.msra.mxu0 %v329
    %423 = vmatmul.f32.gmra.mxu0 %v154
    %v424 = vpop.f32.mrf.mxu0
    %v425 = vadd.f32 %v379, %v424
    %426 = vmatmul.f32.gmra.mxu0 %v155
    %v427 = vpop.f32.mrf.mxu0
    %v428 = vadd.f32 %v379, %v427
    %429 = vdwg.mxu0
    %430 = vmatpush.msra.mxu0 %v375
    %431 = vmatpush.msra.mxu0 %v372
    %432 = vmatpush.msra.mxu0 %v369
    %433 = vmatpush.msra.mxu0 %v366
    %434 = vmatpush.msra.mxu0 %v363
    %435 = vmatpush.msra.mxu0 %v360
    %436 = vmatpush.msra.mxu0 %v357
    %437 = vmatpush.msra.mxu0 %v354
    %438 = vmatpush.msra.mxu0 %v351
    %439 = vmatpush.msra.mxu0 %v348
    %440 = vmatpush.msra.mxu0 %v345
    %441 = vmatpush.msra.mxu0 %v342
    %442 = vmatpush.msra.mxu0 %v339
    %443 = vmatpush.msra.mxu0 %v336
    %444 = vmatpush.msra.mxu0 %v333
    %445 = vmatpush.msra.mxu0 %v330
    %446 = vmatmul.f32.gmra.mxu0 %v154
    %v447 = vpop.f32.mrf.mxu0
    %v448 = vadd.f32 %v380, %v447
    %449 = vmatmul.f32.gmra.mxu0 %v155
    %v450 = vpop.f32.mrf.mxu0
    %v451 = vadd.f32 %v380, %v450
    %452 = vdwg.mxu0
    %v453 = vadd.f32 %v277, %v402
    %v454 = vadd.f32 %v280, %v405
    %v455 = vxor.u32 %v453, 2147483648
    %v456 = vxor.u32 %v454, 2147483648
    %v457 = vmul.f32 %v455, 1.442695
    %v458 = vpow.pop %v457
    %v459 = vmul.f32 %v456, 1.442695
    %v460 = vpow.pop %v459
    %v461 = vadd.f32 %v458, 1.0
    %v462 = vadd.f32 %v460, 1.0
    %v463 = vrcp.pop %v461
    %v464 = vmul.f32 %v461, %v463
    %v465 = vsub.f32 1.0, %v464
    %v466 = vmul.f32 %v463, %v465
    %v467 = vadd.f32 %v463, %v466
    %vm468 = vweird.f32 %v461
    %vm469 = vweird.f32 %v463
    %vm470 = vmor %vm468, %vm469
    %v471 = vsel %vm470, %v463, %v467
    %v472 = vand.u32 2147483647, %v461
    %vm473 = vcmp.eq.f32.partialorder %v472, 8.507059e+37
    %v474 = vand.u32 %v461, 2147483648
    %v475 = vor.u32 1.1754944e-38, %v474
    %v476 = vsel %vm473, %v475, %v471
    %v477 = vmul.f32 1.0, %v476
    %v478 = vrcp.pop %v462
    %v479 = vmul.f32 %v462, %v478
    %v480 = vsub.f32 1.0, %v479
    %v481 = vmul.f32 %v478, %v480
    %v482 = vadd.f32 %v478, %v481
    %vm483 = vweird.f32 %v462
    %vm484 = vweird.f32 %v478
    %vm485 = vmor %vm483, %vm484
    %v486 = vsel %vm485, %v478, %v482
    %v487 = vand.u32 2147483647, %v462
    %vm488 = vcmp.eq.f32.partialorder %v487, 8.507059e+37
    %v489 = vand.u32 %v462, 2147483648
    %v490 = vor.u32 1.1754944e-38, %v489
    %v491 = vsel %vm488, %v490, %v486
    %v492 = vmul.f32 1.0, %v491
    %v493 = vadd.f32 %v300, %v425
    %v494 = vadd.f32 %v303, %v428
    %v495 = vxor.u32 %v493, 2147483648
    %v496 = vxor.u32 %v494, 2147483648
    %v497 = vmul.f32 %v495, 1.442695
    %v498 = vpow.pop %v497
    %v499 = vmul.f32 %v496, 1.442695
    %v500 = vpow.pop %v499
    %v501 = vadd.f32 %v498, 1.0
    %v502 = vadd.f32 %v500, 1.0
    %v503 = vrcp.pop %v501
    %v504 = vmul.f32 %v501, %v503
    %v505 = vsub.f32 1.0, %v504
    %v506 = vmul.f32 %v503, %v505
    %v507 = vadd.f32 %v503, %v506
    %vm508 = vweird.f32 %v501
    %vm509 = vweird.f32 %v503
    %vm510 = vmor %vm508, %vm509
    %v511 = vsel %vm510, %v503, %v507
    %v512 = vand.u32 2147483647, %v501
    %vm513 = vcmp.eq.f32.partialorder %v512, 8.507059e+37
    %v514 = vand.u32 %v501, 2147483648
    %v515 = vor.u32 1.1754944e-38, %v514
    %v516 = vsel %vm513, %v515, %v511
    %v517 = vmul.f32 1.0, %v516
    %v518 = vrcp.pop %v502
    %v519 = vmul.f32 %v502, %v518
    %v520 = vsub.f32 1.0, %v519
    %v521 = vmul.f32 %v518, %v520
    %v522 = vadd.f32 %v518, %v521
    %vm523 = vweird.f32 %v502
    %vm524 = vweird.f32 %v518
    %vm525 = vmor %vm523, %vm524
    %v526 = vsel %vm525, %v518, %v522
    %v527 = vand.u32 2147483647, %v502
    %vm528 = vcmp.eq.f32.partialorder %v527, 8.507059e+37
    %v529 = vand.u32 %v502, 2147483648
    %v530 = vor.u32 1.1754944e-38, %v529
    %v531 = vsel %vm528, %v530, %v526
    %v532 = vmul.f32 1.0, %v531
    %v533 = vmul.f32 %v477, %v448
    %v534 = vmul.f32 %v492, %v451
    %v535 = vadd.f32 %v323, %v533
    %v536 = vadd.f32 %v326, %v534
    %v537 = vtanh.pop %v535
    %v538 = vtanh.pop %v536
    %v539 = vsub.f32 1.0, %v517
    %v540 = vsub.f32 1.0, %v532
    %v541 = vmul.f32 %v539, %v537
    %v542 = vmul.f32 %v540, %v538
    %v543 = vmul.f32 %v517, %v154
    %v544 = vmul.f32 %v532, %v155
    %v545 = vadd.f32 %v541, %v543
    %v546 = vadd.f32 %v542, %v544
    %v547 = vld [vmem:[#allocation14] sm:$0xff]
    %v548 = vld [vmem:[#allocation14 + $0x8] sm:$0xff]
    %v549 = vld [vmem:[#allocation14 + $0x10] sm:$0xff]
    %v550 = vld [vmem:[#allocation14 + $0x18] sm:$0xff]
    %v551 = vld [vmem:[#allocation14 + $0x20] sm:$0xff]
    %v552 = vld [vmem:[#allocation14 + $0x28] sm:$0xff]
    %v553 = vld [vmem:[#allocation14 + $0x30] sm:$0xff]
    %v554 = vld [vmem:[#allocation14 + $0x38] sm:$0xff]
    %v555 = vld [vmem:[#allocation14 + $0x40] sm:$0xff]
    %v556 = vld [vmem:[#allocation14 + $0x48] sm:$0xff]
    %v557 = vld [vmem:[#allocation14 + $0x50] sm:$0xff]
    %v558 = vld [vmem:[#allocation14 + $0x58] sm:$0xff]
    %v559 = vld [vmem:[#allocation14 + $0x60] sm:$0xff]
    %v560 = vld [vmem:[#allocation14 + $0x68] sm:$0xff]
    %v561 = vld [vmem:[#allocation14 + $0x70] sm:$0xff]
    %v562 = vld [vmem:[#allocation14 + $0x78] sm:$0xff]
    %v563 = vld [vmem:[%s9] sm:$0x1]
    %v565 = vperm.slane %v563, 0
    %567 = vmatpush.msra.mxu0 %v562
    %568 = vmatpush.msra.mxu0 %v561
    %569 = vmatpush.msra.mxu0 %v560
    %570 = vmatpush.msra.mxu0 %v559
    %571 = vmatpush.msra.mxu0 %v558
    %572 = vmatpush.msra.mxu0 %v557
    %573 = vmatpush.msra.mxu0 %v556
    %574 = vmatpush.msra.mxu0 %v555
    %575 = vmatpush.msra.mxu0 %v554
    %576 = vmatpush.msra.mxu0 %v553
    %577 = vmatpush.msra.mxu0 %v552
    %578 = vmatpush.msra.mxu0 %v551
    %579 = vmatpush.msra.mxu0 %v550
    %580 = vmatpush.msra.mxu0 %v549
    %581 = vmatpush.msra.mxu0 %v548
    %582 = vmatpush.msra.mxu0 %v547
    %583 = vmatmul.f32.gmra.mxu0 %v545
    %v584 = vpop.f32.mrf.mxu0
    %v585 = vadd.f32 %v565, %v584
    %586 = vmatmul.f32.gmra.mxu0 %v546
    %v587 = vpop.f32.mrf.mxu0
    %v588 = vadd.f32 %v565, %v587
    %589 = vdwg.mxu0
    %590 = vst [vmem:[#allocation2] sm:$0xff] %v545
    %591 = vst [vmem:[#allocation2 + $0x8] sm:$0xff] %v546
    %592 = vst [vmem:[#allocation16] sm:$0xff] %v545
    %593 = vst [vmem:[#allocation16 + $0x8] sm:$0xff] %v546
    %594 = vst [vmem:[#allocation15] sm:$0xff] %v585
    %595 = vst [vmem:[#allocation15 + $0x8] sm:$0xff] %v588
    // Predicated region
    $region74: #{tpu_custom_call.1} parent=1 // pred_check
      _
    $region75: #{tpu_custom_call.1} parent=1 // pred_check_branch
      %597 = sbr.rel (0) target = $region77
    $region76: #{tpu_custom_call.1} parent=1 // pred_region
      %599 = vsyncadd [#allocation5], 0
      %s600 = sshll.u32 [#allocation15], 4
      %s601 = int_to_ptr.vmem [resolvable:$true] %s600
      %s602 = sshll.u32 %s10, 4
      %s603 = int_to_ptr.hbm [resolvable:$true] %s602
      %608 = dma.vmem_to_hbm [thread:$0]  %s601, 256, %s603, [#allocation5], 128, 128, 8
    $region77: #{tpu_custom_call.1} parent=1 // pred_fallthru
      _
    // Predicated region
    $region78: #{tpu_custom_call.1} parent=1 // pred_check
      _
    $region79: #{tpu_custom_call.1} parent=1 // pred_check_branch
      %610 = sbr.rel (0) target = $region81
    $region80: #{tpu_custom_call.1} parent=1 // pred_region
      %612 = vsyncadd [#allocation17], 0
      %s613 = sshll.u32 [#allocation16], 4
      %s614 = int_to_ptr.vmem [resolvable:$true] %s613
      %s615 = sshll.u32 %s11, 4
      %s616 = int_to_ptr.hbm [resolvable:$true] %s615
      %621 = dma.vmem_to_hbm [thread:$0]  %s614, 256, %s616, [#allocation17], 128, 128, 8
    $region81: #{tpu_custom_call.1} parent=1 // pred_fallthru
      _
    // Predicated region
    $region82: #{tpu_custom_call.1} parent=1 // pred_check
      _
    $region83: #{tpu_custom_call.1} parent=1 // pred_check_branch
      %623 = sbr.rel (0) target = $region85
    $region84: #{tpu_custom_call.1} parent=1 // pred_region
      %625 = dma.done [#allocation5], 256
    $region85: #{tpu_custom_call.1} parent=1 // pred_fallthru
      _
    // Predicated region
    $region86: #{tpu_custom_call.1} parent=1 // pred_check
      _
    $region87: #{tpu_custom_call.1} parent=1 // pred_check_branch
      %627 = sbr.rel (0) target = $region89
    $region88: #{tpu_custom_call.1} parent=1 // pred_region
      %629 = dma.done [#allocation17], 256
    $region89: #{tpu_custom_call.1} parent=1 // pred_fallthru
      _
    %630 = vsyncpa [#allocation4], 1
    %631 = vsyncpa [#allocation7], 1
    %632 = vsyncpa [#allocation10], 1
    %633 = vsyncpa [#allocation13], 1
    %634 = vsyncpa [#allocation5], 1
    %635 = vsyncpa [#allocation17], 1

</llo_original>
